<compile_context>
chip_gen: v5e
topology: v5e:2x2
jax: 0.10.0
libtpu: 0.0.40
codegen_flags: <defaults>
</compile_context>

<pallas_src>
import functools

import jax
import jax.numpy as jnp
from jax.experimental import pallas as pl
from jax.experimental.pallas import tpu as pltpu

HIDDEN = 120   # true hidden width of the torch module
HPAD = 128     # lane-dense padded hidden width
APAD = 128     # lane-dense padded action width


def _qfunc_kernel(n_actions, x_ref, w1_ref, b1_ref, w2_ref, b2_ref,
                  w3_ref, b3_ref, q_ref, a_ref):
    # x arrives in f32 (single HBM read); cast to bf16 only for the MXU operands.
    # Accumulate in f32 (preferred_element_type); bias add + ReLU stay in f32.
    x = x_ref[...].astype(jnp.bfloat16)
    h = jnp.dot(x, w1_ref[...], preferred_element_type=jnp.float32) + b1_ref[...]
    h = jnp.maximum(h, 0.0)
    h = jnp.dot(h.astype(w2_ref.dtype), w2_ref[...],
                preferred_element_type=jnp.float32) + b2_ref[...]
    h = jnp.maximum(h, 0.0)
    q = jnp.dot(h.astype(w3_ref.dtype), w3_ref[...],
                preferred_element_type=jnp.float32) + b3_ref[...]

    # Lane-dense (TB, 128) f32 store; pad lanes are exact zeros.
    q_ref[...] = q

    # Fused greedy action: mask pad lanes with -inf so they never win, then
    # argmax = max-reduce + first-index min-reduce (ties -> lowest index,
    # matching jnp.argmax / torch.argmax semantics).
    lane = jax.lax.broadcasted_iota(jnp.int32, q.shape, 1)
    q_masked = jnp.where(lane < n_actions, q, -jnp.inf)
    m = jnp.max(q_masked, axis=-1, keepdims=True)
    idx = jnp.min(jnp.where(q_masked == m, lane, APAD), axis=-1, keepdims=True)
    a_ref[...] = idx.astype(jnp.int32)


def _round_up(n, m):
    return ((n + m - 1) // m) * m


def _pad2(a, rows, cols):
    return jnp.pad(a, ((0, rows - a.shape[0]), (0, cols - a.shape[1])))


def init_params(key, obs_size, n_actions, hidden=HIDDEN):
    """Deterministic synthetic init (uniform, torch-Linear-like fan-in scaling).

    Weights are stored as (in, out) so the kernel computes y = x @ W + b,
    equivalent to torch.nn.Linear's x @ W.T + b.
    """
    ks = jax.random.split(key, 6)

    def linear(kw, kb, fan_in, fan_out):
        bound = 1.0 / jnp.sqrt(jnp.float32(fan_in))
        w = jax.random.uniform(kw, (fan_in, fan_out), jnp.float32, -bound, bound)
        b = jax.random.uniform(kb, (1, fan_out), jnp.float32, -bound, bound)
        return w, b

    w1, b1 = linear(ks[0], ks[1], obs_size, hidden)
    w2, b2 = linear(ks[2], ks[3], hidden, hidden)
    w3, b3 = linear(ks[4], ks[5], hidden, n_actions)
    return {"w1": w1, "b1": b1, "w2": w2, "b2": b2, "w3": w3, "b3": b3}


def prepare_params(params):
    """Zero-pad hidden->128 and actions->128; weights -> bf16, biases stay f32."""
    obs = params["w1"].shape[0]
    return {
        "w1": _pad2(params["w1"], obs, HPAD).astype(jnp.bfloat16),
        "b1": _pad2(params["b1"], 1, HPAD),
        "w2": _pad2(params["w2"], HPAD, HPAD).astype(jnp.bfloat16),
        "b2": _pad2(params["b2"], 1, HPAD),
        "w3": _pad2(params["w3"], HPAD, APAD).astype(jnp.bfloat16),
        "b3": _pad2(params["b3"], 1, APAD),
    }


def qfunction_forward(x, pparams, n_actions, tb=512):
    """Fused QFunction forward.

    x: (B, obs_size) float32
    pparams: output of prepare_params() (padded, bf16 weights / f32 biases)
    Returns (q_values (B, n_actions) f32, greedy_actions (B,) int32), i.e. the
    contents of pfrl's DiscreteActionValue (q_values + greedy_actions).
    """
    B, obs = x.shape

    # Batch tiling: pad B to a sublane-aligned multiple of the tile size.
    b8 = _round_up(max(B, 8), 8)
    TB = tb if b8 >= tb else b8
    B_pad = _round_up(b8, TB)
    if B_pad != B:
        x = jnp.pad(x, ((0, B_pad - B), (0, 0)))
    nb = B_pad // TB

    def w_spec(shape):
        return pl.BlockSpec(shape, lambda i: (0, 0))

    flops = 2 * B_pad * (obs * HPAD + HPAD * HPAD + HPAD * APAD)
    bytes_accessed = (
        B_pad * obs * 4                                     # x (f32, read once)
        + (obs * HPAD + HPAD * HPAD + HPAD * APAD) * 2      # weights (bf16)
        + (2 * HPAD + APAD) * 4                             # biases (f32)
        + B_pad * APAD * 4 + B_pad * 4                      # outputs
    )

    q_pad, a_pad = pl.pallas_call(
        functools.partial(_qfunc_kernel, n_actions),
        out_shape=(
            jax.ShapeDtypeStruct((B_pad, APAD), jnp.float32),
            jax.ShapeDtypeStruct((B_pad, 1), jnp.int32),
        ),
        grid=(nb,),
        in_specs=[
            pl.BlockSpec((TB, obs), lambda i: (i, 0)),      # x: tiled over batch
            w_spec((obs, HPAD)), w_spec((1, HPAD)),          # w1, b1 (resident)
            w_spec((HPAD, HPAD)), w_spec((1, HPAD)),         # w2, b2
            w_spec((HPAD, APAD)), w_spec((1, APAD)),         # w3, b3
        ],
        out_specs=(
            pl.BlockSpec((TB, APAD), lambda i: (i, 0)),      # lane-dense q store
            pl.BlockSpec((TB, 1), lambda i: (i, 0)),         # greedy action
        ),
        compiler_params=pltpu.CompilerParams(
            dimension_semantics=("parallel",)),
        cost_estimate=pl.CostEstimate(
            flops=flops, transcendentals=0, bytes_accessed=bytes_accessed),
    )(x, pparams["w1"], pparams["b1"], pparams["w2"], pparams["b2"],
      pparams["w3"], pparams["b3"])

    return q_pad[:B, :n_actions], a_pad[:B, 0]


def _reference(x, p):
    h = jnp.maximum(x @ p["w1"] + p["b1"], 0.0)
    h = jnp.maximum(h @ p["w2"] + p["b2"], 0.0)
    return h @ p["w3"] + p["b3"]


if __name__ == "__main__":
    key = jax.random.PRNGKey(0)
    k_x, k_p = jax.random.split(key)

    batch, obs_size, n_actions = 200, 32, 4
    x = jax.random.normal(k_x, (batch, obs_size), jnp.float32)
    params = init_params(k_p, obs_size, n_actions)
    pparams = prepare_params(params)

    # tb=64 here so the smoke test exercises a multi-step grid (grid=(4,)) plus
    # batch padding/slicing; production default is tb=512.
    q, greedy = qfunction_forward(x, pparams, n_actions, tb=64)
    q, greedy = jax.block_until_ready((q, greedy))

    ref = _reference(x, params)
    assert q.shape == (batch, n_actions)
    assert greedy.shape == (batch,)
    # bf16 matmul operands with f32 accumulation: ~1e-2 relative accuracy.
    assert jnp.allclose(q, ref, atol=5e-2, rtol=5e-2)
    assert jnp.array_equal(greedy, jnp.argmax(q, axis=-1))

    # TODO(synk): pfrl.action_value.DiscreteActionValue is a host-side container;
    # its q_values and greedy_actions both come from this kernel, and .max() is a
    # trivial host-side reduce if ever needed.
    print("KERNEL_OK")
</pallas_src>

<mosaic_0001>
module attributes {stable_mosaic.version = 11 : i64} {
  func.func @_qfunc_kernel(%arg0: i32, %arg1: memref<64x32xf32, #tpu.memory_space<vmem>>, %arg2: memref<32x128xbf16, #tpu.memory_space<vmem>>, %arg3: memref<1x128xf32, #tpu.memory_space<vmem>>, %arg4: memref<128x128xbf16, #tpu.memory_space<vmem>>, %arg5: memref<1x128xf32, #tpu.memory_space<vmem>>, %arg6: memref<128x128xbf16, #tpu.memory_space<vmem>>, %arg7: memref<1x128xf32, #tpu.memory_space<vmem>>, %arg8: memref<64x128xf32, #tpu.memory_space<vmem>>, %arg9: memref<64x1xi32, #tpu.memory_space<vmem>>) attributes {dimension_semantics = [#tpu.dimension_semantics<parallel>], iteration_bounds = array<i64: 4>, scalar_prefetch = 0 : i64, scratch_operands = 0 : i64, tpu.core_type = #tpu.core_type<tc>, window_params = [{transform_indices = @transform_0, window_bounds = array<i64: 64, 32>}, {pipeline_mode = #tpu.pipeline_mode<synchronous>, transform_indices = @transform_1, window_bounds = array<i64: 32, 128>}, {pipeline_mode = #tpu.pipeline_mode<synchronous>, transform_indices = @transform_2, window_bounds = array<i64: 1, 128>}, {pipeline_mode = #tpu.pipeline_mode<synchronous>, transform_indices = @transform_3, window_bounds = array<i64: 128, 128>}, {pipeline_mode = #tpu.pipeline_mode<synchronous>, transform_indices = @transform_4, window_bounds = array<i64: 1, 128>}, {pipeline_mode = #tpu.pipeline_mode<synchronous>, transform_indices = @transform_5, window_bounds = array<i64: 128, 128>}, {pipeline_mode = #tpu.pipeline_mode<synchronous>, transform_indices = @transform_6, window_bounds = array<i64: 1, 128>}, {transform_indices = @transform_7, window_bounds = array<i64: 64, 128>}, {transform_indices = @transform_8, window_bounds = array<i64: 64, 1>}]} {
    %c0 = arith.constant 0 : index
    %c0_0 = arith.constant 0 : index
    %0 = vector.load %arg1[%c0, %c0_0] : memref<64x32xf32, #tpu.memory_space<vmem>>, vector<64x32xf32>
    %1 = arith.truncf %0 : vector<64x32xf32> to vector<64x32xbf16>
    %c0_1 = arith.constant 0 : index
    %c0_2 = arith.constant 0 : index
    %2 = vector.load %arg2[%c0_1, %c0_2] : memref<32x128xbf16, #tpu.memory_space<vmem>>, vector<32x128xbf16>
    %cst = arith.constant dense<0.000000e+00> : vector<64x128xf32>
    %3 = tpu.matmul %1, %2, %cst {dimension_numbers = #tpu.dot_dimension_numbers<[1], [0], [0], [1], [0, 0, 1, 1], [], []>} : vector<64x32xbf16>, vector<32x128xbf16>, vector<64x128xf32> -> vector<64x128xf32>
    %c0_3 = arith.constant 0 : index
    %c0_4 = arith.constant 0 : index
    %4 = vector.load %arg3[%c0_3, %c0_4] : memref<1x128xf32, #tpu.memory_space<vmem>>, vector<1x128xf32>
    %5 = vector.broadcast %4 : vector<1x128xf32> to vector<64x128xf32>
    %6 = arith.addf %3, %5 : vector<64x128xf32>
    %cst_5 = arith.constant 0.000000e+00 : f32
    %7 = vector.broadcast %cst_5 : f32 to vector<64x128xf32>
    %8 = arith.maximumf %6, %7 : vector<64x128xf32>
    %9 = arith.truncf %8 : vector<64x128xf32> to vector<64x128xbf16>
    %c0_6 = arith.constant 0 : index
    %c0_7 = arith.constant 0 : index
    %10 = vector.load %arg4[%c0_6, %c0_7] : memref<128x128xbf16, #tpu.memory_space<vmem>>, vector<128x128xbf16>
    %cst_8 = arith.constant dense<0.000000e+00> : vector<64x128xf32>
    %11 = tpu.matmul %9, %10, %cst_8 {dimension_numbers = #tpu.dot_dimension_numbers<[1], [0], [0], [1], [0, 0, 1, 1], [], []>} : vector<64x128xbf16>, vector<128x128xbf16>, vector<64x128xf32> -> vector<64x128xf32>
    %c0_9 = arith.constant 0 : index
    %c0_10 = arith.constant 0 : index
    %12 = vector.load %arg5[%c0_9, %c0_10] : memref<1x128xf32, #tpu.memory_space<vmem>>, vector<1x128xf32>
    %13 = vector.broadcast %12 : vector<1x128xf32> to vector<64x128xf32>
    %14 = arith.addf %11, %13 : vector<64x128xf32>
    %cst_11 = arith.constant 0.000000e+00 : f32
    %15 = vector.broadcast %cst_11 : f32 to vector<64x128xf32>
    %16 = arith.maximumf %14, %15 : vector<64x128xf32>
    %17 = arith.truncf %16 : vector<64x128xf32> to vector<64x128xbf16>
    %c0_12 = arith.constant 0 : index
    %c0_13 = arith.constant 0 : index
    %18 = vector.load %arg6[%c0_12, %c0_13] : memref<128x128xbf16, #tpu.memory_space<vmem>>, vector<128x128xbf16>
    %cst_14 = arith.constant dense<0.000000e+00> : vector<64x128xf32>
    %19 = tpu.matmul %17, %18, %cst_14 {dimension_numbers = #tpu.dot_dimension_numbers<[1], [0], [0], [1], [0, 0, 1, 1], [], []>} : vector<64x128xbf16>, vector<128x128xbf16>, vector<64x128xf32> -> vector<64x128xf32>
    %c0_15 = arith.constant 0 : index
    %c0_16 = arith.constant 0 : index
    %20 = vector.load %arg7[%c0_15, %c0_16] : memref<1x128xf32, #tpu.memory_space<vmem>>, vector<1x128xf32>
    %21 = vector.broadcast %20 : vector<1x128xf32> to vector<64x128xf32>
    %22 = arith.addf %19, %21 : vector<64x128xf32>
    %c0_17 = arith.constant 0 : index
    %c0_18 = arith.constant 0 : index
    %23 = vector.load %arg8[%c0_17, %c0_18] : memref<64x128xf32, #tpu.memory_space<vmem>>, vector<64x128xf32>
    tpu.vector_store %arg8[%c0_17, %c0_18], %22 {strides = array<i32>} : memref<64x128xf32, #tpu.memory_space<vmem>>, vector<64x128xf32>,
    %24 = tpu.iota {dimensions = array<i32: 1>} : vector<64x128xi32>
    %c4_i32 = arith.constant 4 : i32
    %25 = vector.broadcast %c4_i32 : i32 to vector<64x128xi32>
    %26 = arith.cmpi slt, %24, %25 : vector<64x128xi32>
    %cst_19 = arith.constant 0xFF800000 : f32
    %27 = vector.broadcast %cst_19 : f32 to vector<64x128xf32>
    %28 = arith.select %26, %22, %27 : vector<64x128xi1>, vector<64x128xf32>
    %cst_20 = arith.constant dense<0xFF800000> : vector<64xf32>
    %29 = vector.multi_reduction <maximumf>, %28, %cst_20 [1] : vector<64x128xf32> to vector<64xf32>
    %30 = vector.shape_cast %29 : vector<64xf32> to vector<64x1xf32>
    %31 = vector.broadcast %30 : vector<64x1xf32> to vector<64x128xf32>
    %32 = arith.cmpf oeq, %28, %31 : vector<64x128xf32>
    %c128_i32 = arith.constant 128 : i32
    %33 = vector.broadcast %c128_i32 : i32 to vector<64x128xi32>
    %34 = arith.select %32, %24, %33 : vector<64x128xi1>, vector<64x128xi32>
    %cst_21 = arith.constant dense<2147483647> : vector<64xi32>
    %35 = vector.multi_reduction <minsi>, %34, %cst_21 [1] : vector<64x128xi32> to vector<64xi32>
    %36 = vector.shape_cast %35 : vector<64xi32> to vector<64x1xi32>
    %c0_22 = arith.constant 0 : index
    %c0_23 = arith.constant 0 : index
    %37 = vector.load %arg9[%c0_22, %c0_23] : memref<64x1xi32, #tpu.memory_space<vmem>>, vector<64x1xi32>
    tpu.vector_store %arg9[%c0_22, %c0_23], %36 {strides = array<i32>} : memref<64x1xi32, #tpu.memory_space<vmem>>, vector<64x1xi32>,
    return
  }
  func.func @transform_0(%arg0: i32) -> (i32, i32) {
    %c0_i32 = arith.constant 0 : i32
    %c0_i32_0 = arith.constant 0 : i32
    return %arg0, %c0_i32 : i32, i32
  }
  func.func @transform_1(%arg0: i32) -> (i32, i32) {
    %c0_i32 = arith.constant 0 : i32
    %c0_i32_0 = arith.constant 0 : i32
    %c0_i32_1 = arith.constant 0 : i32
    return %c0_i32, %c0_i32_0 : i32, i32
  }
  func.func @transform_2(%arg0: i32) -> (i32, i32) {
    %c0_i32 = arith.constant 0 : i32
    %c0_i32_0 = arith.constant 0 : i32
    %c0_i32_1 = arith.constant 0 : i32
    return %c0_i32, %c0_i32_0 : i32, i32
  }
  func.func @transform_3(%arg0: i32) -> (i32, i32) {
    %c0_i32 = arith.constant 0 : i32
    %c0_i32_0 = arith.constant 0 : i32
    %c0_i32_1 = arith.constant 0 : i32
    return %c0_i32, %c0_i32_0 : i32, i32
  }
  func.func @transform_4(%arg0: i32) -> (i32, i32) {
    %c0_i32 = arith.constant 0 : i32
    %c0_i32_0 = arith.constant 0 : i32
    %c0_i32_1 = arith.constant 0 : i32
    return %c0_i32, %c0_i32_0 : i32, i32
  }
  func.func @transform_5(%arg0: i32) -> (i32, i32) {
    %c0_i32 = arith.constant 0 : i32
    %c0_i32_0 = arith.constant 0 : i32
    %c0_i32_1 = arith.constant 0 : i32
    return %c0_i32, %c0_i32_0 : i32, i32
  }
  func.func @transform_6(%arg0: i32) -> (i32, i32) {
    %c0_i32 = arith.constant 0 : i32
    %c0_i32_0 = arith.constant 0 : i32
    %c0_i32_1 = arith.constant 0 : i32
    return %c0_i32, %c0_i32_0 : i32, i32
  }
  func.func @transform_7(%arg0: i32) -> (i32, i32) {
    %c0_i32 = arith.constant 0 : i32
    %c0_i32_0 = arith.constant 0 : i32
    return %arg0, %c0_i32 : i32, i32
  }
  func.func @transform_8(%arg0: i32) -> (i32, i32) {
    %c0_i32 = arith.constant 0 : i32
    %c0_i32_0 = arith.constant 0 : i32
    return %arg0, %c0_i32 : i32, i32
  }
}

</mosaic_0001>

<llo_original>
// kernel: tpu_custom_call.1
$region0: #{tpu_custom_call.1}
  #allocation0 [shape = 'u32[]', space=smem, size = 0x4, offset = 0x4, fixed_abs, tag = 'smem constant byte address 0x4 - core index']
  #allocation1 [shape = 'u32[72,128]{1,0:T(1,128)}', space=vmem, size = 0x9000, scoped, tag = 'internal scratch']
  %s0 = inlined_call_operand.vmem [shape: f32[256,32], index: 0, kind: input, shape index: {}]
  %s1 = inlined_call_operand.vmem [shape: bf16[32,128], index: 1, kind: input, shape index: {}]
  %s2 = inlined_call_operand.vmem [shape: f32[1,128], index: 2, kind: input, shape index: {}]
  %s3 = inlined_call_operand.vmem [shape: bf16[128,128], index: 3, kind: input, shape index: {}]
  %s4 = inlined_call_operand.vmem [shape: f32[1,128], index: 4, kind: input, shape index: {}]
  %s5 = inlined_call_operand.vmem [shape: bf16[128,128], index: 5, kind: input, shape index: {}]
  %s6 = inlined_call_operand.vmem [shape: f32[1,128], index: 6, kind: input, shape index: {}]
  %s7 = inlined_call_operand.hbm [shape: f32[256,128], index: 7, kind: output, shape index: {0}]
  %s8 = inlined_call_operand.vmem [shape: s32[256,1], index: 8, kind: output, shape index: {1}]
  %9 = xla_tuple %s7, %s8
  %s10 = sld [smem:[#allocation0]]
  $region69: #{tpu_custom_call.1} parent=0
    _
  %s12 = ssub.s32 1, %s10
  %s13 = scalar_select 0, %s12, %s10
  $region1: #{tpu_custom_call.1} parent=0
    #allocation2 [shape = 'u8[65536]{0}', space=vmem, size = 0x10000, scoped, tag = 'output window, operand 0']
    #allocation3 [shape = 's32[2]{0}', space=sflag, size = 0x8, scoped, tag = 'scoped memory for tpu_custom_call.1']
    %14 = vsyncpa [#allocation3], 0
    %s15 = scalar_lea.sflag [#allocation3], 1
    %16 = vsyncpa %s15, 0
    loop: start=0, step=1, limit=6
    $region2: #{tpu_custom_call.1} parent=1 // loop_pre_header
      _
    $region3: #{tpu_custom_call.1} parent=1 // loop_header
      %s18 = sphi 0, %s22
      %p19 = scmp.ge.s32.totalorder %s18, 6
      %s28 = sphi 0, %s30
      %s31 = sphi 0, %s28
      %s32 = sphi 0, %s31
      %s48 = sphi 0, %s32
      %s52 = sphi 0, %s52
      %s54 = sphi 0, %s52
      %s55 = sphi 0, %s54
      %s69 = sphi 0, %s55
      %s73 = sphi 0, %s73
      %s75 = sphi 0, %s73
      %s76 = sphi 0, %s75
      %s90 = sphi 0, %s76
      %s94 = sphi 0, %s94
      %s96 = sphi 0, %s94
      %s97 = sphi 0, %s96
      %s111 = sphi 0, %s97
      %s115 = sphi 0, %s115
      %s117 = sphi 0, %s115
      %s118 = sphi 0, %s117
      %s132 = sphi 0, %s118
      %s136 = sphi 0, %s136
      %s138 = sphi 0, %s136
      %s139 = sphi 0, %s138
      %s153 = sphi 0, %s139
      %s157 = sphi 0, %s157
      %s159 = sphi 0, %s157
      %s160 = sphi 0, %s159
      %s174 = sphi 0, %s160
      %s180 = sphi 0, %s182
      %s183 = sphi 0, %s180
      %s184 = sphi 0, %s183
      %s200 = sphi 0, %s184
      %s206 = sphi 0, %s208
      %s209 = sphi 0, %s206
      %s210 = sphi 0, %s209
      %s226 = sphi 0, %s210
    $region4: #{tpu_custom_call.1} parent=1 // loop_header_branch
      %21 = sbr.rel (%p19) target = $region8
    $region5: #{tpu_custom_call.1} parent=1 // loop_body
      %s23 = ssub.s32 %s18, 1
      %s24 = ssub.s32 %s18, 2
      %s25 = sadd.s32 %s18, 1
      %s26 = ssub.s32 %s18, %s25
      %p27 = scmp.eq.s32.totalorder %s26, 0
      %s29 = sadd.s32 %s28, 1
      %s30 = scalar_select %p27, %s28, %s29
      %p33 = pneg %p27
      %p34 = scmp.eq.s32.totalorder %s18, 3
      %p35 = por %p33, %p34
      %p36 = scmp.ne.s32.totalorder %s28, %s31
      %p37 = scmp.eq.s32.totalorder %s18, 0
      %p38 = por %p36, %p37
      %p39 = scmp.ne.s32.totalorder %s28, %s31
      %p40 = scmp.eq.s32.totalorder %s23, 3
      %p41 = por %p39, %p40
      %p42 = scmp.ne.s32.totalorder %s31, %s32
      %p43 = scmp.eq.s32.totalorder %s23, 0
      %p44 = por %p42, %p43
      %p45 = scmp.ne.s32.totalorder %s31, %s32
      %p46 = scmp.eq.s32.totalorder %s24, 3
      %p47 = por %p45, %p46
      %p49 = scmp.ne.s32.totalorder %s32, %s48
      %p50 = scmp.eq.s32.totalorder %s24, 0
      %p51 = por %p49, %p50
      %s53 = sadd.s32 %s52, 1
      %p56 = scmp.eq.s32.totalorder %s18, 3
      %p57 = scmp.ne.s32.totalorder %s52, %s54
      %p58 = scmp.eq.s32.totalorder %s18, 0
      %p59 = por %p57, %p58
      %p60 = scmp.ne.s32.totalorder %s52, %s54
      %p61 = scmp.eq.s32.totalorder %s23, 3
      %p62 = por %p60, %p61
      %p63 = scmp.ne.s32.totalorder %s54, %s55
      %p64 = scmp.eq.s32.totalorder %s23, 0
      %p65 = por %p63, %p64
      %p66 = scmp.ne.s32.totalorder %s54, %s55
      %p67 = scmp.eq.s32.totalorder %s24, 3
      %p68 = por %p66, %p67
      %p70 = scmp.ne.s32.totalorder %s55, %s69
      %p71 = scmp.eq.s32.totalorder %s24, 0
      %p72 = por %p70, %p71
      %s74 = sadd.s32 %s73, 1
      %p77 = scmp.eq.s32.totalorder %s18, 3
      %p78 = scmp.ne.s32.totalorder %s73, %s75
      %p79 = scmp.eq.s32.totalorder %s18, 0
      %p80 = por %p78, %p79
      %p81 = scmp.ne.s32.totalorder %s73, %s75
      %p82 = scmp.eq.s32.totalorder %s23, 3
      %p83 = por %p81, %p82
      %p84 = scmp.ne.s32.totalorder %s75, %s76
      %p85 = scmp.eq.s32.totalorder %s23, 0
      %p86 = por %p84, %p85
      %p87 = scmp.ne.s32.totalorder %s75, %s76
      %p88 = scmp.eq.s32.totalorder %s24, 3
      %p89 = por %p87, %p88
      %p91 = scmp.ne.s32.totalorder %s76, %s90
      %p92 = scmp.eq.s32.totalorder %s24, 0
      %p93 = por %p91, %p92
      %s95 = sadd.s32 %s94, 1
      %p98 = scmp.eq.s32.totalorder %s18, 3
      %p99 = scmp.ne.s32.totalorder %s94, %s96
      %p100 = scmp.eq.s32.totalorder %s18, 0
      %p101 = por %p99, %p100
      %p102 = scmp.ne.s32.totalorder %s94, %s96
      %p103 = scmp.eq.s32.totalorder %s23, 3
      %p104 = por %p102, %p103
      %p105 = scmp.ne.s32.totalorder %s96, %s97
      %p106 = scmp.eq.s32.totalorder %s23, 0
      %p107 = por %p105, %p106
      %p108 = scmp.ne.s32.totalorder %s96, %s97
      %p109 = scmp.eq.s32.totalorder %s24, 3
      %p110 = por %p108, %p109
      %p112 = scmp.ne.s32.totalorder %s97, %s111
      %p113 = scmp.eq.s32.totalorder %s24, 0
      %p114 = por %p112, %p113
      %s116 = sadd.s32 %s115, 1
      %p119 = scmp.eq.s32.totalorder %s18, 3
      %p120 = scmp.ne.s32.totalorder %s115, %s117
      %p121 = scmp.eq.s32.totalorder %s18, 0
      %p122 = por %p120, %p121
      %p123 = scmp.ne.s32.totalorder %s115, %s117
      %p124 = scmp.eq.s32.totalorder %s23, 3
      %p125 = por %p123, %p124
      %p126 = scmp.ne.s32.totalorder %s117, %s118
      %p127 = scmp.eq.s32.totalorder %s23, 0
      %p128 = por %p126, %p127
      %p129 = scmp.ne.s32.totalorder %s117, %s118
      %p130 = scmp.eq.s32.totalorder %s24, 3
      %p131 = por %p129, %p130
      %p133 = scmp.ne.s32.totalorder %s118, %s132
      %p134 = scmp.eq.s32.totalorder %s24, 0
      %p135 = por %p133, %p134
      %s137 = sadd.s32 %s136, 1
      %p140 = scmp.eq.s32.totalorder %s18, 3
      %p141 = scmp.ne.s32.totalorder %s136, %s138
      %p142 = scmp.eq.s32.totalorder %s18, 0
      %p143 = por %p141, %p142
      %p144 = scmp.ne.s32.totalorder %s136, %s138
      %p145 = scmp.eq.s32.totalorder %s23, 3
      %p146 = por %p144, %p145
      %p147 = scmp.ne.s32.totalorder %s138, %s139
      %p148 = scmp.eq.s32.totalorder %s23, 0
      %p149 = por %p147, %p148
      %p150 = scmp.ne.s32.totalorder %s138, %s139
      %p151 = scmp.eq.s32.totalorder %s24, 3
      %p152 = por %p150, %p151
      %p154 = scmp.ne.s32.totalorder %s139, %s153
      %p155 = scmp.eq.s32.totalorder %s24, 0
      %p156 = por %p154, %p155
      %s158 = sadd.s32 %s157, 1
      %p161 = scmp.eq.s32.totalorder %s18, 3
      %p162 = scmp.ne.s32.totalorder %s157, %s159
      %p163 = scmp.eq.s32.totalorder %s18, 0
      %p164 = por %p162, %p163
      %p165 = scmp.ne.s32.totalorder %s157, %s159
      %p166 = scmp.eq.s32.totalorder %s23, 3
      %p167 = por %p165, %p166
      %p168 = scmp.ne.s32.totalorder %s159, %s160
      %p169 = scmp.eq.s32.totalorder %s23, 0
      %p170 = por %p168, %p169
      %p171 = scmp.ne.s32.totalorder %s159, %s160
      %p172 = scmp.eq.s32.totalorder %s24, 3
      %p173 = por %p171, %p172
      %p175 = scmp.ne.s32.totalorder %s160, %s174
      %p176 = scmp.eq.s32.totalorder %s24, 0
      %p177 = por %p175, %p176
      %s178 = ssub.s32 %s18, %s25
      %p179 = scmp.eq.s32.totalorder %s178, 0
      %s181 = sadd.s32 %s180, 1
      %s182 = scalar_select %p179, %s180, %s181
      %p185 = pneg %p179
      %p186 = scmp.eq.s32.totalorder %s18, 3
      %p187 = por %p185, %p186
      %p188 = scmp.ne.s32.totalorder %s180, %s183
      %p189 = scmp.eq.s32.totalorder %s18, 0
      %p190 = por %p188, %p189
      %p191 = scmp.ne.s32.totalorder %s180, %s183
      %p192 = scmp.eq.s32.totalorder %s23, 3
      %p193 = por %p191, %p192
      %p194 = scmp.ne.s32.totalorder %s183, %s184
      %p195 = scmp.eq.s32.totalorder %s23, 0
      %p196 = por %p194, %p195
      %p197 = scmp.ne.s32.totalorder %s183, %s184
      %p198 = scmp.eq.s32.totalorder %s24, 3
      %p199 = por %p197, %p198
      %p201 = scmp.ne.s32.totalorder %s184, %s200
      %p202 = scmp.eq.s32.totalorder %s24, 0
      %p203 = por %p201, %p202
      %s204 = ssub.s32 %s18, %s25
      %p205 = scmp.eq.s32.totalorder %s204, 0
      %s207 = sadd.s32 %s206, 1
      %s208 = scalar_select %p205, %s206, %s207
      %p211 = pneg %p205
      %p212 = scmp.eq.s32.totalorder %s18, 3
      %p213 = por %p211, %p212
      %p214 = scmp.ne.s32.totalorder %s206, %s209
      %p215 = scmp.eq.s32.totalorder %s18, 0
      %p216 = por %p214, %p215
      %p217 = scmp.ne.s32.totalorder %s206, %s209
      %p218 = scmp.eq.s32.totalorder %s23, 3
      %p219 = por %p217, %p218
      %p220 = scmp.ne.s32.totalorder %s209, %s210
      %p221 = scmp.eq.s32.totalorder %s23, 0
      %p222 = por %p220, %p221
      %p223 = scmp.ne.s32.totalorder %s209, %s210
      %p224 = scmp.eq.s32.totalorder %s24, 3
      %p225 = por %p223, %p224
      %p227 = scmp.ne.s32.totalorder %s210, %s226
      %p228 = scmp.eq.s32.totalorder %s24, 0
      %p229 = por %p227, %p228
      %p230 = scmp.le.s32.totalorder 1, %s18
      %p231 = scmp.lt.s32.totalorder %s18, 5
      %p232 = pnand %p230, %p231
      %p233 = pneg %p232
      // Predicated region
      $region9: #{tpu_custom_call.1} parent=5 // pred_check
        _
      $region10: #{tpu_custom_call.1} parent=5 // pred_check_branch
        %235 = sbr.rel (%p232) target = $region12
      $region11: #{tpu_custom_call.1} parent=5 // pred_region
        %s236 = ssub.s32 %s18, 1
        // Predicated region
        $region13: #{tpu_custom_call.1} parent=11 // pred_check
          %p237 = pneg %p65
        $region14: #{tpu_custom_call.1} parent=11 // pred_check_branch
          %239 = sbr.rel (%p237) target = $region16
        $region15: #{tpu_custom_call.1} parent=11 // pred_region
          _
        $region16: #{tpu_custom_call.1} parent=11 // pred_fallthru
          _
        // Predicated region
        $region17: #{tpu_custom_call.1} parent=11 // pred_check
          %p240 = pneg %p86
        $region18: #{tpu_custom_call.1} parent=11 // pred_check_branch
          %242 = sbr.rel (%p240) target = $region20
        $region19: #{tpu_custom_call.1} parent=11 // pred_region
          _
        $region20: #{tpu_custom_call.1} parent=11 // pred_fallthru
          _
        // Predicated region
        $region21: #{tpu_custom_call.1} parent=11 // pred_check
          %p243 = pneg %p107
        $region22: #{tpu_custom_call.1} parent=11 // pred_check_branch
          %245 = sbr.rel (%p243) target = $region24
        $region23: #{tpu_custom_call.1} parent=11 // pred_region
          _
        $region24: #{tpu_custom_call.1} parent=11 // pred_fallthru
          _
        // Predicated region
        $region25: #{tpu_custom_call.1} parent=11 // pred_check
          %p246 = pneg %p128
        $region26: #{tpu_custom_call.1} parent=11 // pred_check_branch
          %248 = sbr.rel (%p246) target = $region28
        $region27: #{tpu_custom_call.1} parent=11 // pred_region
          _
        $region28: #{tpu_custom_call.1} parent=11 // pred_fallthru
          _
        // Predicated region
        $region29: #{tpu_custom_call.1} parent=11 // pred_check
          %p249 = pneg %p149
        $region30: #{tpu_custom_call.1} parent=11 // pred_check_branch
          %251 = sbr.rel (%p249) target = $region32
        $region31: #{tpu_custom_call.1} parent=11 // pred_region
          _
        $region32: #{tpu_custom_call.1} parent=11 // pred_fallthru
          _
        // Predicated region
        $region33: #{tpu_custom_call.1} parent=11 // pred_check
          %p252 = pneg %p170
        $region34: #{tpu_custom_call.1} parent=11 // pred_check_branch
          %254 = sbr.rel (%p252) target = $region36
        $region35: #{tpu_custom_call.1} parent=11 // pred_region
          _
        $region36: #{tpu_custom_call.1} parent=11 // pred_fallthru
          _
      $region12: #{tpu_custom_call.1} parent=5 // pred_fallthru
        _
      %p255 = scmp.lt.s32.totalorder %s18, 4
      // Predicated region
      $region37: #{tpu_custom_call.1} parent=5 // pred_check
        %p256 = pneg %p255
      $region38: #{tpu_custom_call.1} parent=5 // pred_check_branch
        %258 = sbr.rel (%p256) target = $region40
      $region39: #{tpu_custom_call.1} parent=5 // pred_region
        // Predicated region
        $region41: #{tpu_custom_call.1} parent=39 // pred_check
          %p259 = pneg %p38
        $region42: #{tpu_custom_call.1} parent=39 // pred_check_branch
          %261 = sbr.rel (%p259) target = $region44
        $region43: #{tpu_custom_call.1} parent=39 // pred_region
          %s262 = smul.u32 8, %s18
          %p263 = scmp.lt.s32.totalorder %s262, 31
          %s264 = scalar_select %p263, %s262, 31
          %s265 = smul.addr %s264, 8
          %s266 = scalar_lea.vmem %s0, %s265
          %s267 = smul.u32 8, %s18
        $region44: #{tpu_custom_call.1} parent=39 // pred_fallthru
          _
      $region40: #{tpu_custom_call.1} parent=5 // pred_fallthru
        _
      %p268 = scmp.le.s32.totalorder 1, %s18
      %p269 = scmp.lt.s32.totalorder %s18, 5
      %p270 = pnand %p268, %p269
      %p271 = pneg %p270
      // Predicated region
      $region45: #{tpu_custom_call.1} parent=5 // pred_check
        _
      $region46: #{tpu_custom_call.1} parent=5 // pred_check_branch
        %273 = sbr.rel (%p270) target = $region48
      $region47: #{tpu_custom_call.1} parent=5 // pred_region
        %s274 = ssub.s32 %s18, 1
        %s275 = smul.u32 8, %s23
        %p276 = scmp.lt.s32.totalorder %s275, 31
        %s277 = scalar_select %p276, %s275, 31
        %s278 = smul.addr %s277, 8
        %s279 = scalar_lea.vmem %s0, %s278
        %p280 = pneg %p44
        %p281 = pneg %p41
        %p282 = pneg %p65
        %p283 = pneg %p62
        %p284 = pneg %p86
        %p285 = pneg %p83
        %p286 = pneg %p107
        %p287 = pneg %p104
        %p288 = pneg %p128
        %p289 = pneg %p125
        %p290 = pneg %p149
        %p291 = pneg %p146
        %p292 = pneg %p170
        %p293 = pneg %p167
        %p294 = pneg %p196
        %p295 = pneg %p193
        %s296 = sand.u32 %s183, 1
        %s297 = scalar_lea.sflag [#allocation3], %s296
        %s298 = sand.u32 %s183, 1
        %s299 = smul.addr %s298, 64
        %s300 = scalar_lea.vmem [#allocation2], %s299
        %p301 = pneg %p222
        %p302 = pneg %p219
        %s303 = smul.u32 8, %s23
        %p304 = scmp.lt.s32.totalorder %s303, 31
        %s305 = scalar_select %p304, %s303, 31
        %s306 = smul.addr %s305, 8
        %s307 = scalar_lea.vmem %s8, %s306
        %s308 = smul.u32 8, %s23
        %p309 = scmp.lt.s32.totalorder %s308, 31
        %s310 = scalar_select %p309, %s308, 31
        %s311 = smul.addr %s310, 8
        %s312 = scalar_lea.vmem %s0, %s311
        %s313 = smul.u32 8, %s23
        %s314 = smul.u32 8, %s23
        %s315 = smul.u32 8, %s23
        %p316 = scmp.lt.s32.totalorder %s315, 31
        %s317 = scalar_select %p316, %s315, 31
        %s318 = smul.addr %s317, 8
        %s319 = scalar_lea.vmem %s8, %s318
        %s320 = smul.u32 8, %s23
        %v322 = vld [vmem:[%s312] sm:$0xff]
        %v323 = vld [vmem:[%s312 + $0x8] sm:$0xff]
        %v324 = vld [vmem:[%s312 + $0x10] sm:$0xff]
        %v325 = vld [vmem:[%s312 + $0x18] sm:$0xff]
        %v326 = vld [vmem:[%s312 + $0x20] sm:$0xff]
        %v327 = vld [vmem:[%s312 + $0x28] sm:$0xff]
        %v328 = vld [vmem:[%s312 + $0x30] sm:$0xff]
        %v329 = vld [vmem:[%s312 + $0x38] sm:$0xff]
        %v330 = vpack.c.bf16 %v323, %v322
        %v331 = vpack.c.bf16 %v325, %v324
        %v332 = vpack.c.bf16 %v327, %v326
        %v333 = vpack.c.bf16 %v329, %v328
        %v334 = vld [vmem:[%s1] sm:$0xf]
        %v335 = vld [vmem:[%s1 + $0x4] sm:$0xf]
        %v336 = vld [vmem:[%s1 + $0x8] sm:$0xf]
        %v337 = vld [vmem:[%s1 + $0xc] sm:$0xf]
        %v338 = vld [vmem:[%s2] sm:$0x1]
        %v340 = vperm.slane %v338, 0
        %v346 = vunpack.c.l.b16 %v334
        %v347 = vunpack.c.l.b16 %v335
        %v348 = vunpack.c.l.b16 %v336
        %v349 = vunpack.c.l.b16 %v337
        %v350 = vpack.c.b16 %v347, %v346
        %v351 = vpack.c.b16 %v349, %v348
        %vm354 = vcmask 261120
        %v356 = vsel %vm354, %v330, 0
        %v359 = vsel %vm354, %v331, 0
        %v362 = vsel %vm354, %v332, 0
        %v365 = vsel %vm354, %v333, 0
        %367 = vmatpush.bf16.msra.mxu0 0
        %368 = vmatpush.bf16.msra.mxu0 0
        %369 = vmatpush.bf16.msra.mxu0 0
        %370 = vmatpush.bf16.msra.mxu0 0
        %371 = vmatpush.bf16.msra.mxu0 0
        %372 = vmatpush.bf16.msra.mxu0 0
        %373 = vmatpush.bf16.msra.mxu0 %v351
        %374 = vmatpush.bf16.msra.mxu0 %v350
        %375 = vmatmul.bf16.gmra.mxu0 %v356
        %v376 = vpop.f32.mrf.mxu0
        %v377 = vadd.f32 %v340, %v376
        %v378 = vpop.f32.mrf.mxu0
        %v379 = vadd.f32 %v340, %v378
        %380 = vmatmul.bf16.gmra.mxu0 %v359
        %v381 = vpop.f32.mrf.mxu0
        %v382 = vadd.f32 %v340, %v381
        %v383 = vpop.f32.mrf.mxu0
        %v384 = vadd.f32 %v340, %v383
        %385 = vmatmul.bf16.gmra.mxu0 %v362
        %v386 = vpop.f32.mrf.mxu0
        %v387 = vadd.f32 %v340, %v386
        %v388 = vpop.f32.mrf.mxu0
        %v389 = vadd.f32 %v340, %v388
        %390 = vmatmul.bf16.gmra.mxu0 %v365
        %v391 = vpop.f32.mrf.mxu0
        %v392 = vadd.f32 %v340, %v391
        %v393 = vpop.f32.mrf.mxu0
        %v394 = vadd.f32 %v340, %v393
        %395 = vdwg.mxu0
        %v396 = vmax.f32 %v377, 0.0
        %v397 = vmax.f32 %v379, 0.0
        %v398 = vmax.f32 %v382, 0.0
        %v399 = vmax.f32 %v384, 0.0
        %v400 = vmax.f32 %v387, 0.0
        %v401 = vmax.f32 %v389, 0.0
        %v402 = vmax.f32 %v392, 0.0
        %v403 = vmax.f32 %v394, 0.0
        %v404 = vpack.c.bf16 %v397, %v396
        %v405 = vpack.c.bf16 %v399, %v398
        %v406 = vpack.c.bf16 %v401, %v400
        %v407 = vpack.c.bf16 %v403, %v402
        %v408 = vld [vmem:[%s3] sm:$0xf]
        %v409 = vld [vmem:[%s3 + $0x4] sm:$0xf]
        %v410 = vld [vmem:[%s3 + $0x8] sm:$0xf]
        %v411 = vld [vmem:[%s3 + $0xc] sm:$0xf]
        %v412 = vld [vmem:[%s3 + $0x10] sm:$0xf]
        %v413 = vld [vmem:[%s3 + $0x14] sm:$0xf]
        %v414 = vld [vmem:[%s3 + $0x18] sm:$0xf]
        %v415 = vld [vmem:[%s3 + $0x1c] sm:$0xf]
        %v416 = vld [vmem:[%s3 + $0x20] sm:$0xf]
        %v417 = vld [vmem:[%s3 + $0x24] sm:$0xf]
        %v418 = vld [vmem:[%s3 + $0x28] sm:$0xf]
        %v419 = vld [vmem:[%s3 + $0x2c] sm:$0xf]
        %v420 = vld [vmem:[%s3 + $0x30] sm:$0xf]
        %v421 = vld [vmem:[%s3 + $0x34] sm:$0xf]
        %v422 = vld [vmem:[%s3 + $0x38] sm:$0xf]
        %v423 = vld [vmem:[%s3 + $0x3c] sm:$0xf]
        %v424 = vld [vmem:[%s4] sm:$0x1]
        %v426 = vperm.slane %v424, 0
        %v444 = vunpack.c.l.b16 %v408
        %v445 = vunpack.c.l.b16 %v409
        %v446 = vunpack.c.l.b16 %v410
        %v447 = vunpack.c.l.b16 %v411
        %v448 = vunpack.c.l.b16 %v412
        %v449 = vunpack.c.l.b16 %v413
        %v450 = vunpack.c.l.b16 %v414
        %v451 = vunpack.c.l.b16 %v415
        %v452 = vunpack.c.l.b16 %v416
        %v453 = vunpack.c.l.b16 %v417
        %v454 = vunpack.c.l.b16 %v418
        %v455 = vunpack.c.l.b16 %v419
        %v456 = vunpack.c.l.b16 %v420
        %v457 = vunpack.c.l.b16 %v421
        %v458 = vunpack.c.l.b16 %v422
        %v459 = vunpack.c.l.b16 %v423
        %v460 = vpack.c.b16 %v445, %v444
        %v461 = vpack.c.b16 %v447, %v446
        %v462 = vpack.c.b16 %v449, %v448
        %v463 = vpack.c.b16 %v451, %v450
        %v464 = vpack.c.b16 %v453, %v452
        %v465 = vpack.c.b16 %v455, %v454
        %v466 = vpack.c.b16 %v457, %v456
        %v467 = vpack.c.b16 %v459, %v458
        %476 = vmatpush.bf16.msra.mxu0 %v467
        %477 = vmatpush.bf16.msra.mxu0 %v466
        %478 = vmatpush.bf16.msra.mxu0 %v465
        %479 = vmatpush.bf16.msra.mxu0 %v464
        %480 = vmatpush.bf16.msra.mxu0 %v463
        %481 = vmatpush.bf16.msra.mxu0 %v462
        %482 = vmatpush.bf16.msra.mxu0 %v461
        %483 = vmatpush.bf16.msra.mxu0 %v460
        %484 = vmatmul.bf16.gmra.mxu0 %v404
        %v485 = vpop.f32.mrf.mxu0
        %v486 = vadd.f32 %v426, %v485
        %v487 = vpop.f32.mrf.mxu0
        %v488 = vadd.f32 %v426, %v487
        %489 = vmatmul.bf16.gmra.mxu0 %v405
        %v490 = vpop.f32.mrf.mxu0
        %v491 = vadd.f32 %v426, %v490
        %v492 = vpop.f32.mrf.mxu0
        %v493 = vadd.f32 %v426, %v492
        %494 = vmatmul.bf16.gmra.mxu0 %v406
        %v495 = vpop.f32.mrf.mxu0
        %v496 = vadd.f32 %v426, %v495
        %v497 = vpop.f32.mrf.mxu0
        %v498 = vadd.f32 %v426, %v497
        %499 = vmatmul.bf16.gmra.mxu0 %v407
        %v500 = vpop.f32.mrf.mxu0
        %v501 = vadd.f32 %v426, %v500
        %v502 = vpop.f32.mrf.mxu0
        %v503 = vadd.f32 %v426, %v502
        %504 = vdwg.mxu0
        %v505 = vmax.f32 %v486, 0.0
        %v506 = vmax.f32 %v488, 0.0
        %v507 = vmax.f32 %v491, 0.0
        %v508 = vmax.f32 %v493, 0.0
        %v509 = vmax.f32 %v496, 0.0
        %v510 = vmax.f32 %v498, 0.0
        %v511 = vmax.f32 %v501, 0.0
        %v512 = vmax.f32 %v503, 0.0
        %v513 = vpack.c.bf16 %v506, %v505
        %v514 = vpack.c.bf16 %v508, %v507
        %v515 = vpack.c.bf16 %v510, %v509
        %v516 = vpack.c.bf16 %v512, %v511
        %v517 = vld [vmem:[%s5] sm:$0xf]
        %v518 = vld [vmem:[%s5 + $0x4] sm:$0xf]
        %v519 = vld [vmem:[%s5 + $0x8] sm:$0xf]
        %v520 = vld [vmem:[%s5 + $0xc] sm:$0xf]
        %v521 = vld [vmem:[%s5 + $0x10] sm:$0xf]
        %v522 = vld [vmem:[%s5 + $0x14] sm:$0xf]
        %v523 = vld [vmem:[%s5 + $0x18] sm:$0xf]
        %v524 = vld [vmem:[%s5 + $0x1c] sm:$0xf]
        %v525 = vld [vmem:[%s5 + $0x20] sm:$0xf]
        %v526 = vld [vmem:[%s5 + $0x24] sm:$0xf]
        %v527 = vld [vmem:[%s5 + $0x28] sm:$0xf]
        %v528 = vld [vmem:[%s5 + $0x2c] sm:$0xf]
        %v529 = vld [vmem:[%s5 + $0x30] sm:$0xf]
        %v530 = vld [vmem:[%s5 + $0x34] sm:$0xf]
        %v531 = vld [vmem:[%s5 + $0x38] sm:$0xf]
        %v532 = vld [vmem:[%s5 + $0x3c] sm:$0xf]
        %v533 = vld [vmem:[%s6] sm:$0x1]
        %v535 = vperm.slane %v533, 0
        %v553 = vunpack.c.l.b16 %v517
        %v554 = vunpack.c.l.b16 %v518
        %v555 = vunpack.c.l.b16 %v519
        %v556 = vunpack.c.l.b16 %v520
        %v557 = vunpack.c.l.b16 %v521
        %v558 = vunpack.c.l.b16 %v522
        %v559 = vunpack.c.l.b16 %v523
        %v560 = vunpack.c.l.b16 %v524
        %v561 = vunpack.c.l.b16 %v525
        %v562 = vunpack.c.l.b16 %v526
        %v563 = vunpack.c.l.b16 %v527
        %v564 = vunpack.c.l.b16 %v528
        %v565 = vunpack.c.l.b16 %v529
        %v566 = vunpack.c.l.b16 %v530
        %v567 = vunpack.c.l.b16 %v531
        %v568 = vunpack.c.l.b16 %v532
        %v569 = vpack.c.b16 %v554, %v553
        %v570 = vpack.c.b16 %v556, %v555
        %v571 = vpack.c.b16 %v558, %v557
        %v572 = vpack.c.b16 %v560, %v559
        %v573 = vpack.c.b16 %v562, %v561
        %v574 = vpack.c.b16 %v564, %v563
        %v575 = vpack.c.b16 %v566, %v565
        %v576 = vpack.c.b16 %v568, %v567
        %585 = vmatpush.bf16.msra.mxu0 %v576
        %586 = vmatpush.bf16.msra.mxu0 %v575
        %587 = vmatpush.bf16.msra.mxu0 %v574
        %588 = vmatpush.bf16.msra.mxu0 %v573
        %589 = vmatpush.bf16.msra.mxu0 %v572
        %590 = vmatpush.bf16.msra.mxu0 %v571
        %591 = vmatpush.bf16.msra.mxu0 %v570
        %592 = vmatpush.bf16.msra.mxu0 %v569
        %593 = vmatmul.bf16.gmra.mxu0 %v513
        %v594 = vpop.f32.mrf.mxu0
        %v595 = vadd.f32 %v535, %v594
        %v596 = vpop.f32.mrf.mxu0
        %v597 = vadd.f32 %v535, %v596
        %598 = vmatmul.bf16.gmra.mxu0 %v514
        %v599 = vpop.f32.mrf.mxu0
        %v600 = vadd.f32 %v535, %v599
        %v601 = vpop.f32.mrf.mxu0
        %v602 = vadd.f32 %v535, %v601
        %603 = vmatmul.bf16.gmra.mxu0 %v515
        %v604 = vpop.f32.mrf.mxu0
        %v605 = vadd.f32 %v535, %v604
        %v606 = vpop.f32.mrf.mxu0
        %v607 = vadd.f32 %v535, %v606
        %608 = vmatmul.bf16.gmra.mxu0 %v516
        %v609 = vpop.f32.mrf.mxu0
        %v610 = vadd.f32 %v535, %v609
        %v611 = vpop.f32.mrf.mxu0
        %v612 = vadd.f32 %v535, %v611
        %613 = vdwg.mxu0
        %614 = vst [vmem:[%s300] sm:$0xff] %v595
        %615 = vst [vmem:[%s300 + $0x8] sm:$0xff] %v597
        %616 = vst [vmem:[%s300 + $0x10] sm:$0xff] %v600
        %617 = vst [vmem:[%s300 + $0x18] sm:$0xff] %v602
        %618 = vst [vmem:[%s300 + $0x20] sm:$0xff] %v605
        %619 = vst [vmem:[%s300 + $0x28] sm:$0xff] %v607
        %620 = vst [vmem:[%s300 + $0x30] sm:$0xff] %v610
        %621 = vst [vmem:[%s300 + $0x38] sm:$0xff] %v612
        %v622 = vlaneseq
        %v623 = vand.u32 %v622, 127
        %vm624 = vcmp.lt.s32.totalorder %v623, 4
        %v625 = vsel %vm624, %v595, -inf
        %v626 = vsel %vm624, %v597, -inf
        %v627 = vsel %vm624, %v600, -inf
        %v628 = vsel %vm624, %v602, -inf
        %v629 = vsel %vm624, %v605, -inf
        %v630 = vsel %vm624, %v607, -inf
        %v631 = vsel %vm624, %v610, -inf
        %v632 = vsel %vm624, %v612, -inf
        %633 = vmax.xlane.f32.xlu0 %v625
        %v634 = vpop.xlane.xlu0 %633
        %635 = vmax.xlane.f32.xlu0 %v626
        %v636 = vpop.xlane.xlu0 %635
        %637 = vmax.xlane.f32.xlu0 %v627
        %v638 = vpop.xlane.xlu0 %637
        %639 = vmax.xlane.f32.xlu0 %v628
        %v640 = vpop.xlane.xlu0 %639
        %641 = vmax.xlane.f32.xlu0 %v629
        %v642 = vpop.xlane.xlu0 %641
        %643 = vmax.xlane.f32.xlu0 %v630
        %v644 = vpop.xlane.xlu0 %643
        %645 = vmax.xlane.f32.xlu0 %v631
        %v646 = vpop.xlane.xlu0 %645
        %647 = vmax.xlane.f32.xlu0 %v632
        %v648 = vpop.xlane.xlu0 %647
        %vm649 = vcmp.eq.f32.partialorder %v625, %v634
        %vm650 = vcmp.eq.f32.partialorder %v626, %v636
        %vm651 = vcmp.eq.f32.partialorder %v627, %v638
        %vm652 = vcmp.eq.f32.partialorder %v628, %v640
        %vm653 = vcmp.eq.f32.partialorder %v629, %v642
        %vm654 = vcmp.eq.f32.partialorder %v630, %v644
        %vm655 = vcmp.eq.f32.partialorder %v631, %v646
        %vm656 = vcmp.eq.f32.partialorder %v632, %v648
        %v657 = vsel %vm649, %v623, 128
        %v658 = vsel %vm650, %v623, 128
        %v659 = vsel %vm651, %v623, 128
        %v660 = vsel %vm652, %v623, 128
        %v661 = vsel %vm653, %v623, 128
        %v662 = vsel %vm654, %v623, 128
        %v663 = vsel %vm655, %v623, 128
        %v664 = vsel %vm656, %v623, 128
        %v665 = vand.u32 %v657, 65535
        %v666 = vshra.s32 %v657, 16
        %v667 = vcvt.s32.f32 %v665
        %v668 = vcvt.s32.f32 %v666
        %669 = vmin.xlane.f32.xlu0 %v668
        %v670 = vpop.xlane.xlu0 %669
        %vm671 = vcmp.eq.f32.partialorder %v668, %v670
        %v672 = vsel %vm671, %v667, inf
        %673 = vmin.xlane.f32.xlu0 %v672
        %v674 = vpop.xlane.xlu0 %673
        %v675 = vcvt.f32.s32 %v674
        %v676 = vcvt.f32.s32 %v670
        %v677 = vshll.u32 %v676, 16
        %v678 = vadd.s32 %v677, %v675
        %v679 = vand.u32 %v658, 65535
        %v680 = vshra.s32 %v658, 16
        %v681 = vcvt.s32.f32 %v679
        %v682 = vcvt.s32.f32 %v680
        %683 = vmin.xlane.f32.xlu0 %v682
        %v684 = vpop.xlane.xlu0 %683
        %vm685 = vcmp.eq.f32.partialorder %v682, %v684
        %v686 = vsel %vm685, %v681, inf
        %687 = vmin.xlane.f32.xlu0 %v686
        %v688 = vpop.xlane.xlu0 %687
        %v689 = vcvt.f32.s32 %v688
        %v690 = vcvt.f32.s32 %v684
        %v691 = vshll.u32 %v690, 16
        %v692 = vadd.s32 %v691, %v689
        %v693 = vand.u32 %v659, 65535
        %v694 = vshra.s32 %v659, 16
        %v695 = vcvt.s32.f32 %v693
        %v696 = vcvt.s32.f32 %v694
        %697 = vmin.xlane.f32.xlu0 %v696
        %v698 = vpop.xlane.xlu0 %697
        %vm699 = vcmp.eq.f32.partialorder %v696, %v698
        %v700 = vsel %vm699, %v695, inf
        %701 = vmin.xlane.f32.xlu0 %v700
        %v702 = vpop.xlane.xlu0 %701
        %v703 = vcvt.f32.s32 %v702
        %v704 = vcvt.f32.s32 %v698
        %v705 = vshll.u32 %v704, 16
        %v706 = vadd.s32 %v705, %v703
        %v707 = vand.u32 %v660, 65535
        %v708 = vshra.s32 %v660, 16
        %v709 = vcvt.s32.f32 %v707
        %v710 = vcvt.s32.f32 %v708
        %711 = vmin.xlane.f32.xlu0 %v710
        %v712 = vpop.xlane.xlu0 %711
        %vm713 = vcmp.eq.f32.partialorder %v710, %v712
        %v714 = vsel %vm713, %v709, inf
        %715 = vmin.xlane.f32.xlu0 %v714
        %v716 = vpop.xlane.xlu0 %715
        %v717 = vcvt.f32.s32 %v716
        %v718 = vcvt.f32.s32 %v712
        %v719 = vshll.u32 %v718, 16
        %v720 = vadd.s32 %v719, %v717
        %v721 = vand.u32 %v661, 65535
        %v722 = vshra.s32 %v661, 16
        %v723 = vcvt.s32.f32 %v721
        %v724 = vcvt.s32.f32 %v722
        %725 = vmin.xlane.f32.xlu0 %v724
        %v726 = vpop.xlane.xlu0 %725
        %vm727 = vcmp.eq.f32.partialorder %v724, %v726
        %v728 = vsel %vm727, %v723, inf
        %729 = vmin.xlane.f32.xlu0 %v728
        %v730 = vpop.xlane.xlu0 %729
        %v731 = vcvt.f32.s32 %v730
        %v732 = vcvt.f32.s32 %v726
        %v733 = vshll.u32 %v732, 16
        %v734 = vadd.s32 %v733, %v731
        %v735 = vand.u32 %v662, 65535
        %v736 = vshra.s32 %v662, 16
        %v737 = vcvt.s32.f32 %v735
        %v738 = vcvt.s32.f32 %v736
        %739 = vmin.xlane.f32.xlu0 %v738
        %v740 = vpop.xlane.xlu0 %739
        %vm741 = vcmp.eq.f32.partialorder %v738, %v740
        %v742 = vsel %vm741, %v737, inf
        %743 = vmin.xlane.f32.xlu0 %v742
        %v744 = vpop.xlane.xlu0 %743
        %v745 = vcvt.f32.s32 %v744
        %v746 = vcvt.f32.s32 %v740
        %v747 = vshll.u32 %v746, 16
        %v748 = vadd.s32 %v747, %v745
        %v749 = vand.u32 %v663, 65535
        %v750 = vshra.s32 %v663, 16
        %v751 = vcvt.s32.f32 %v749
        %v752 = vcvt.s32.f32 %v750
        %753 = vmin.xlane.f32.xlu0 %v752
        %v754 = vpop.xlane.xlu0 %753
        %vm755 = vcmp.eq.f32.partialorder %v752, %v754
        %v756 = vsel %vm755, %v751, inf
        %757 = vmin.xlane.f32.xlu0 %v756
        %v758 = vpop.xlane.xlu0 %757
        %v759 = vcvt.f32.s32 %v758
        %v760 = vcvt.f32.s32 %v754
        %v761 = vshll.u32 %v760, 16
        %v762 = vadd.s32 %v761, %v759
        %v763 = vand.u32 %v664, 65535
        %v764 = vshra.s32 %v664, 16
        %v765 = vcvt.s32.f32 %v763
        %v766 = vcvt.s32.f32 %v764
        %767 = vmin.xlane.f32.xlu0 %v766
        %v768 = vpop.xlane.xlu0 %767
        %vm769 = vcmp.eq.f32.partialorder %v766, %v768
        %v770 = vsel %vm769, %v765, inf
        %771 = vmin.xlane.f32.xlu0 %v770
        %v772 = vpop.xlane.xlu0 %771
        %v773 = vcvt.f32.s32 %v772
        %v774 = vcvt.f32.s32 %v768
        %v775 = vshll.u32 %v774, 16
        %v776 = vadd.s32 %v775, %v773
        %vm777 = vcmask 7168
        %778 = vst.msk [vmem:[%s319] sm:$0xff] %vm777, %v678
        %779 = vst.msk [vmem:[%s319 + $0x8] sm:$0xff] %vm777, %v692
        %780 = vst.msk [vmem:[%s319 + $0x10] sm:$0xff] %vm777, %v706
        %781 = vst.msk [vmem:[%s319 + $0x18] sm:$0xff] %vm777, %v720
        %782 = vst.msk [vmem:[%s319 + $0x20] sm:$0xff] %vm777, %v734
        %783 = vst.msk [vmem:[%s319 + $0x28] sm:$0xff] %vm777, %v748
        %784 = vst.msk [vmem:[%s319 + $0x30] sm:$0xff] %vm777, %v762
        %785 = vst.msk [vmem:[%s319 + $0x38] sm:$0xff] %vm777, %v776
        %s786 = sand.u32 %s183, 1
        %s787 = scalar_lea.sflag [#allocation3], %s786
        %s788 = sand.u32 %s183, 1
        %s789 = smul.addr %s788, 64
        %s790 = scalar_lea.vmem [#allocation2], %s789
        %s791 = smul.u32 8, %s23
        %p792 = scmp.lt.s32.totalorder %s791, 31
        %s793 = scalar_select %p792, %s791, 31
        %s794 = smul.addr %s793, 8
        %s795 = scalar_lea.vmem %s8, %s794
        // Predicated region
        $region49: #{tpu_custom_call.1} parent=47 // pred_check
          %p796 = pneg %p193
        $region50: #{tpu_custom_call.1} parent=47 // pred_check_branch
          %798 = sbr.rel (%p796) target = $region52
        $region51: #{tpu_custom_call.1} parent=47 // pred_region
          %s799 = smul.u32 8, %s23
          %801 = vsyncadd %s787, 0
          %s802 = smul.addr %s799, 8
          %s803 = scalar_lea.hbm %s7, %s802
          %s804 = sshll.u32 %s790, 4
          %s805 = int_to_ptr.vmem [resolvable:$true] %s804
          %s806 = sshll.u32 %s803, 4
          %s807 = int_to_ptr.hbm [resolvable:$true] %s806
          %812 = dma.vmem_to_hbm [thread:$0]  %s805, 1024, %s807, %s787, 128, 128, 8
        $region52: #{tpu_custom_call.1} parent=47 // pred_fallthru
          _
        // Predicated region
        $region53: #{tpu_custom_call.1} parent=47 // pred_check
          %p813 = pneg %p219
        $region54: #{tpu_custom_call.1} parent=47 // pred_check_branch
          %815 = sbr.rel (%p813) target = $region56
        $region55: #{tpu_custom_call.1} parent=47 // pred_region
          %s816 = smul.u32 8, %s23
        $region56: #{tpu_custom_call.1} parent=47 // pred_fallthru
          _
      $region48: #{tpu_custom_call.1} parent=5 // pred_fallthru
        _
      %p817 = scmp.le.s32.totalorder 2, %s18
      // Predicated region
      $region57: #{tpu_custom_call.1} parent=5 // pred_check
        %p818 = pneg %p817
      $region58: #{tpu_custom_call.1} parent=5 // pred_check_branch
        %820 = sbr.rel (%p818) target = $region60
      $region59: #{tpu_custom_call.1} parent=5 // pred_region
        %s821 = ssub.s32 %s18, 2
        // Predicated region
        $region61: #{tpu_custom_call.1} parent=59 // pred_check
          %p822 = pneg %p199
        $region62: #{tpu_custom_call.1} parent=59 // pred_check_branch
          %824 = sbr.rel (%p822) target = $region64
        $region63: #{tpu_custom_call.1} parent=59 // pred_region
          %s825 = sand.u32 %s184, 1
          %s826 = scalar_lea.sflag [#allocation3], %s825
          %s827 = sand.u32 %s184, 1
          %s828 = smul.addr %s827, 64
          %s829 = scalar_lea.vmem [#allocation2], %s828
          %831 = dma.done %s826, 1024
        $region64: #{tpu_custom_call.1} parent=59 // pred_fallthru
          _
        // Predicated region
        $region65: #{tpu_custom_call.1} parent=59 // pred_check
          %p832 = pneg %p225
        $region66: #{tpu_custom_call.1} parent=59 // pred_check_branch
          %834 = sbr.rel (%p832) target = $region68
        $region67: #{tpu_custom_call.1} parent=59 // pred_region
          %s835 = smul.u32 8, %s24
          %p836 = scmp.lt.s32.totalorder %s835, 31
          %s837 = scalar_select %p836, %s835, 31
          %s838 = smul.addr %s837, 8
          %s839 = scalar_lea.vmem %s8, %s838
        $region68: #{tpu_custom_call.1} parent=59 // pred_fallthru
          _
      $region60: #{tpu_custom_call.1} parent=5 // pred_fallthru
        _
    $region6: #{tpu_custom_call.1} parent=1 // loop_footer
      %s22 = sadd.s32 1, %s18
    $region7: #{tpu_custom_call.1} parent=1 // loop_footer_branch
      %17 = sbr.rel target = $region3
    $region8: #{tpu_custom_call.1} parent=1 // loop_exit
      _
    %840 = vsyncpa [#allocation3], 1
    %s841 = scalar_lea.sflag [#allocation3], 1
    %842 = vsyncpa %s841, 1

</llo_original>
